<compile_context>
chip_gen: v5e
topology: v5e:2x2
jax: 0.10.0
libtpu: 0.0.40
codegen_flags: <defaults>
</compile_context>

<pallas_src>
import jax
import jax.numpy as jnp
from jax.experimental import pallas as pl
from jax.experimental.pallas import tpu as pltpu


def _frozen_bn_kernel(x_ref, scale_ref, shift_ref, o_ref):
    # scale/shift: per-row (= per (n, c)) fused affine params, f32, (TR, 1).
    scale = scale_ref[...]
    shift = shift_ref[...]
    x = x_ref[...].astype(jnp.float32)
    o_ref[...] = (x * scale + shift).astype(o_ref.dtype)  # broadcast over lanes


def _choose_tiles(rows, cols, itemsize, target_bytes=4 * 1024 * 1024):
    """Pick (row_tile, col_tile): (8,128)-aligned, ~target_bytes per x block."""
    cols_p = pl.cdiv(cols, 128) * 128
    # Column tile: full (lane-padded) width unless that alone exceeds the
    # target at the minimum 8 rows; then split the column axis too.
    max_col = max(128, (target_bytes // (8 * itemsize)) // 128 * 128)
    col_tile = min(cols_p, max_col)
    # Row tile: multiple of 8 that fills ~target_bytes with this column tile.
    rows_cap = pl.cdiv(rows, 8) * 8
    row_tile = (target_bytes // (col_tile * itemsize)) // 8 * 8
    row_tile = max(8, min(rows_cap, row_tile))
    # Prefer >=2 grid steps so the parallel grid can shard across two
    # TensorCores (v7x megacore) when the row count allows it.
    if pl.cdiv(rows, row_tile) * pl.cdiv(cols, col_tile) < 2 and rows > 8:
        row_tile = max(8, pl.cdiv(pl.cdiv(rows, 2), 8) * 8)
    return row_tile, col_tile


def frozen_batch_norm_2d(x, weight, bias, running_mean, running_var, eps=1e-5):
    """x: (N, C, H, W); weight/bias/running_mean/running_var: (C,)."""
    N, C, H, W = x.shape
    dtype = x.dtype
    rows, cols = N * C, H * W

    # Free reshape: NCHW -> (N*C, H*W); spatial axis maps to lanes.
    x2 = x.reshape(rows, cols)

    # Fold the four frozen parameters into two, in f32, on the (C,) vectors
    # (trivial cost, full precision even for bf16 inputs), then broadcast to
    # one value per row (row = one (n, c) pair).
    w32 = weight.astype(jnp.float32)
    b32 = bias.astype(jnp.float32)
    rm32 = running_mean.astype(jnp.float32)
    rv32 = running_var.astype(jnp.float32)
    scale_c = w32 * jax.lax.rsqrt(rv32 + jnp.float32(eps))
    shift_c = b32 - rm32 * scale_c
    scale_rows = jnp.tile(scale_c, N).reshape(rows, 1)
    shift_rows = jnp.tile(shift_c, N).reshape(rows, 1)

    row_tile, col_tile = _choose_tiles(rows, cols, x2.dtype.itemsize)
    grid = (pl.cdiv(rows, row_tile), pl.cdiv(cols, col_tile))

    out = pl.pallas_call(
        _frozen_bn_kernel,
        out_shape=jax.ShapeDtypeStruct((rows, cols), dtype),
        grid=grid,
        in_specs=[
            pl.BlockSpec((row_tile, col_tile), lambda i, j: (i, j)),
            pl.BlockSpec((row_tile, 1), lambda i, j: (i, 0)),
            pl.BlockSpec((row_tile, 1), lambda i, j: (i, 0)),
        ],
        out_specs=pl.BlockSpec((row_tile, col_tile), lambda i, j: (i, j)),
        compiler_params=pltpu.CompilerParams(
            dimension_semantics=("parallel", "parallel"),
            vmem_limit_bytes=48 * 1024 * 1024,
        ),
    )(x2, scale_rows, shift_rows)

    return out.reshape(N, C, H, W)


if __name__ == "__main__":
    key = jax.random.PRNGKey(0)
    kx, kw, kb, km, kv = jax.random.split(key, 5)

    N, C, H, W = 2, 4, 16, 16
    x = jax.random.normal(kx, (N, C, H, W), dtype=jnp.float32)

    # Deterministic "frozen" parameters (module defaults are ones/zeros —
    # perturb them so the math is actually exercised).
    weight = 1.0 + 0.1 * jax.random.normal(kw, (C,), dtype=jnp.float32)
    bias = 0.1 * jax.random.normal(kb, (C,), dtype=jnp.float32)
    running_mean = 0.05 * jax.random.normal(km, (C,), dtype=jnp.float32)
    running_var = 1.0 + 0.1 * jnp.abs(jax.random.normal(kv, (C,), dtype=jnp.float32))
    eps = 1e-5

    y = frozen_batch_norm_2d(x, weight, bias, running_mean, running_var, eps=eps)
    y = jax.block_until_ready(y)

    # Pure-JAX reference (mirrors the PyTorch forward exactly).
    w4 = weight.reshape(1, -1, 1, 1)
    b4 = bias.reshape(1, -1, 1, 1)
    rv4 = running_var.reshape(1, -1, 1, 1)
    rm4 = running_mean.reshape(1, -1, 1, 1)
    scale = w4 * jax.lax.rsqrt(rv4 + eps)
    ref = x * scale + (b4 - rm4 * scale)

    assert y.shape == x.shape and y.dtype == x.dtype
    assert jnp.allclose(y, ref, atol=1e-5, rtol=1e-5)
    print("KERNEL_OK")
</pallas_src>

<mosaic_0001>
module attributes {stable_mosaic.version = 11 : i64} {
  func.func @_frozen_bn_kernel(%arg0: i32, %arg1: i32, %arg2: memref<8x256xf32, #tpu.memory_space<vmem>>, %arg3: memref<8x1xf32, #tpu.memory_space<vmem>>, %arg4: memref<8x1xf32, #tpu.memory_space<vmem>>, %arg5: memref<8x256xf32, #tpu.memory_space<vmem>>) attributes {dimension_semantics = [#tpu.dimension_semantics<parallel>, #tpu.dimension_semantics<parallel>], iteration_bounds = array<i64: 1, 1>, scalar_prefetch = 0 : i64, scratch_operands = 0 : i64, tpu.core_type = #tpu.core_type<tc>, window_params = [{transform_indices = @transform_0, window_bounds = array<i64: 8, 256>}, {transform_indices = @transform_1, window_bounds = array<i64: 8, 1>}, {transform_indices = @transform_2, window_bounds = array<i64: 8, 1>}, {transform_indices = @transform_3, window_bounds = array<i64: 8, 256>}]} {
    %c0 = arith.constant 0 : index
    %c0_0 = arith.constant 0 : index
    %0 = vector.load %arg3[%c0, %c0_0] : memref<8x1xf32, #tpu.memory_space<vmem>>, vector<8x1xf32>
    %c0_1 = arith.constant 0 : index
    %c0_2 = arith.constant 0 : index
    %1 = vector.load %arg4[%c0_1, %c0_2] : memref<8x1xf32, #tpu.memory_space<vmem>>, vector<8x1xf32>
    %c0_3 = arith.constant 0 : index
    %c0_4 = arith.constant 0 : index
    %2 = vector.load %arg2[%c0_3, %c0_4] : memref<8x256xf32, #tpu.memory_space<vmem>>, vector<8x256xf32>
    %3 = vector.broadcast %0 : vector<8x1xf32> to vector<8x256xf32>
    %4 = arith.mulf %2, %3 : vector<8x256xf32>
    %5 = vector.broadcast %1 : vector<8x1xf32> to vector<8x256xf32>
    %6 = arith.addf %4, %5 : vector<8x256xf32>
    %c0_5 = arith.constant 0 : index
    %c0_6 = arith.constant 0 : index
    %7 = vector.load %arg5[%c0_5, %c0_6] : memref<8x256xf32, #tpu.memory_space<vmem>>, vector<8x256xf32>
    tpu.vector_store %arg5[%c0_5, %c0_6], %6 {strides = array<i32>} : memref<8x256xf32, #tpu.memory_space<vmem>>, vector<8x256xf32>,
    return
  }
  func.func @transform_0(%arg0: i32, %arg1: i32) -> (i32, i32) {
    %c0_i32 = arith.constant 0 : i32
    return %arg0, %arg1 : i32, i32
  }
  func.func @transform_1(%arg0: i32, %arg1: i32) -> (i32, i32) {
    %c0_i32 = arith.constant 0 : i32
    %c0_i32_0 = arith.constant 0 : i32
    return %arg0, %c0_i32 : i32, i32
  }
  func.func @transform_2(%arg0: i32, %arg1: i32) -> (i32, i32) {
    %c0_i32 = arith.constant 0 : i32
    %c0_i32_0 = arith.constant 0 : i32
    return %arg0, %c0_i32 : i32, i32
  }
  func.func @transform_3(%arg0: i32, %arg1: i32) -> (i32, i32) {
    %c0_i32 = arith.constant 0 : i32
    return %arg0, %arg1 : i32, i32
  }
}

</mosaic_0001>

<llo_original>
// kernel: tpu_custom_call.1
$region0: #{tpu_custom_call.1}
  #allocation0 [shape = 'u32[]', space=smem, size = 0x4, offset = 0x4, fixed_abs, tag = 'smem constant byte address 0x4 - core index']
  #allocation1 [shape = 'u32[72,128]{1,0:T(1,128)}', space=vmem, size = 0x9000, scoped, tag = 'internal scratch']
  %s0 = inlined_call_operand.vmem [shape: f32[8,256], index: 0, kind: input, shape index: {}]
  %s1 = inlined_call_operand.vmem [shape: f32[8,1], index: 1, kind: input, shape index: {}]
  %s2 = inlined_call_operand.vmem [shape: f32[8,1], index: 2, kind: input, shape index: {}]
  %s3 = inlined_call_operand.hbm [shape: f32[8,256], index: 3, kind: output, shape index: {}]
  %s4 = sld [smem:[#allocation0]]
  $region22: #{tpu_custom_call.1} parent=0
    _
  %s6 = ssub.s32 1, %s4
  %s7 = scalar_select 0, %s6, %s4
  $region1: #{tpu_custom_call.1} parent=0
    #allocation2 [shape = 'u8[8192]{0}', space=vmem, size = 0x2000, scoped, tag = 'output window, operand 0, single buffered']
    #allocation3 [shape = 's32[1]{0}', space=sflag, size = 0x4, scoped, tag = 'scoped memory for tpu_custom_call.1']
    %8 = vsyncpa [#allocation3], 0
    // Predicated region
    $region2: #{tpu_custom_call.1} parent=1 // pred_check
      _
    $region3: #{tpu_custom_call.1} parent=1 // pred_check_branch
      %10 = sbr.rel (0) target = $region5
    $region4: #{tpu_custom_call.1} parent=1 // pred_region
      _
    $region5: #{tpu_custom_call.1} parent=1 // pred_fallthru
      _
    // Predicated region
    $region6: #{tpu_custom_call.1} parent=1 // pred_check
      _
    $region7: #{tpu_custom_call.1} parent=1 // pred_check_branch
      %12 = sbr.rel (0) target = $region9
    $region8: #{tpu_custom_call.1} parent=1 // pred_region
      _
    $region9: #{tpu_custom_call.1} parent=1 // pred_fallthru
      _
    // Predicated region
    $region10: #{tpu_custom_call.1} parent=1 // pred_check
      _
    $region11: #{tpu_custom_call.1} parent=1 // pred_check_branch
      %14 = sbr.rel (0) target = $region13
    $region12: #{tpu_custom_call.1} parent=1 // pred_region
      _
    $region13: #{tpu_custom_call.1} parent=1 // pred_fallthru
      _
    %v15 = vld [vmem:[%s1] sm:$0xff]
    %v16 = vld [vmem:[%s2] sm:$0xff]
    %v17 = vld [vmem:[%s0] sm:$0xff]
    %v18 = vld [vmem:[%s0 + $0x8] sm:$0xff]
    %20 = vset.pattern.permute.xlu0 0
    %21 = vperm.xlu0 %20, %v15
    %v22 = vpop.permute.xlu0 %21
    %v24 = vmul.f32 %v17, %v22
    %v25 = vmul.f32 %v18, %v22
    %27 = vset.pattern.permute.xlu0 0
    %28 = vperm.xlu0 %27, %v16
    %v29 = vpop.permute.xlu0 %28
    %v31 = vadd.f32 %v24, %v29
    %v32 = vadd.f32 %v25, %v29
    %33 = vst [vmem:[#allocation2] sm:$0xff] %v31
    %34 = vst [vmem:[#allocation2 + $0x8] sm:$0xff] %v32
    // Predicated region
    $region14: #{tpu_custom_call.1} parent=1 // pred_check
      _
    $region15: #{tpu_custom_call.1} parent=1 // pred_check_branch
      %36 = sbr.rel (0) target = $region17
    $region16: #{tpu_custom_call.1} parent=1 // pred_region
      %38 = vsyncadd [#allocation3], 0
      %s40 = sshll.u32 [#allocation2], 4
      %s41 = int_to_ptr.vmem [resolvable:$true] %s40
      %s42 = sshll.u32 %s3, 4
      %s43 = int_to_ptr.hbm [resolvable:$true] %s42
      %45 = dma.vmem_to_hbm [thread:$0]  %s41, 256, %s43, [#allocation3]
    $region17: #{tpu_custom_call.1} parent=1 // pred_fallthru
      _
    // Predicated region
    $region18: #{tpu_custom_call.1} parent=1 // pred_check
      _
    $region19: #{tpu_custom_call.1} parent=1 // pred_check_branch
      %47 = sbr.rel (0) target = $region21
    $region20: #{tpu_custom_call.1} parent=1 // pred_region
      %49 = dma.done [#allocation3], 256
    $region21: #{tpu_custom_call.1} parent=1 // pred_fallthru
      _
    %50 = vsyncpa [#allocation3], 1

</llo_original>
